<compile_context>
chip_gen: v5e
topology: v5e:2x2
jax: 0.10.0
libtpu: 0.0.40
codegen_flags: <defaults>
</compile_context>

<pallas_src>
import math
import jax
import jax.numpy as jnp
from jax import lax
from jax.experimental import pallas as pl
from jax.experimental.pallas import tpu as pltpu


_INV_SQRT2 = 1.0 / math.sqrt(2.0)


def _exact_gelu(x):
    # torch.nn.GELU() default is the exact (erf) formulation
    return 0.5 * x * (1.0 + lax.erf(x * _INV_SQRT2))


def _patch_encoding_kernel(x_ref, w1_ref, b1_ref, w2_ref, b2_ref, o_ref):
    # x_ref:  (1, 4*C_in, TN)    space-to-depth input, spatial on the lane axis
    # w1_ref: (4*mid, 4*C_in)    block-diagonal conv1 weight (W1 repeated per sub-pixel)
    # b1_ref: (4*mid, 1)
    # w2_ref: (embed_dim, 4*mid) conv2 weight packed over (di, dj, mid)
    # b2_ref: (embed_dim, 1)
    # o_ref:  (1, embed_dim, TN) lane-dense, NCHW-flat output tile
    x = x_ref[0]                                                    # (4*C_in, TN)

    # conv1 (1x1) + bias + exact GELU — one MXU pass, K = 4*C_in
    h = jnp.dot(w1_ref[...], x, preferred_element_type=jnp.float32) + b1_ref[...]
    h = _exact_gelu(h)                                              # (4*mid, TN)

    # conv2 (2x2 / stride 2) + bias — one MXU pass, K = 4*mid
    y = jnp.dot(w2_ref[...], h, preferred_element_type=jnp.float32) + b2_ref[...]
    o_ref[0] = y.astype(o_ref.dtype)                                # (embed_dim, TN)


def _choose_spatial_tile(n, max_tile=2048):
    """Largest lane-friendly tile of the flattened output-spatial axis."""
    if n <= max_tile:
        return n
    t = max_tile - (max_tile % 128)
    while t >= 128:
        if n % t == 0:
            return t
        t -= 128
    return n  # fall back to no spatial tiling


def patch_encoding_pallas(x_nchw, w1, b1, w2, b2):
    """
    x_nchw: (B, C_in, H, W) float32
    w1: (mid, C_in, 1, 1)  b1: (mid,)         (torch Conv2d OIHW layout)
    w2: (embed_dim, mid, 2, 2)  b2: (embed_dim,)
    returns: (B, embed_dim, H//2, W//2) float32 (NCHW, like PyTorch)
    """
    B, C_in, H, W = x_nchw.shape
    mid, c1, kh1, kw1 = w1.shape
    embed_dim, c2, kh2, kw2 = w2.shape
    assert (kh1, kw1) == (1, 1) and c1 == C_in, "conv1 must be 1x1 (patch_size == 2)"
    assert (kh2, kw2) == (2, 2) and c2 == mid, "conv2 must be 2x2"
    assert H % 2 == 0 and W % 2 == 0, "H and W must be even"
    Ho, Wo = H // 2, W // 2
    N = Ho * Wo

    # ---- wrapper-side repacking (plain JAX glue) ----
    # space-to-depth: (B, C, H, W) -> (B, 4*C_in, Ho*Wo), channel axis ordered (di, dj, c)
    x_s2d = jnp.transpose(
        x_nchw.reshape(B, C_in, Ho, 2, Wo, 2), (0, 3, 5, 1, 2, 4)
    ).reshape(B, 4 * C_in, N)

    w1_mat = w1[:, :, 0, 0]                                    # (mid, C_in)
    w1_bd = jnp.kron(jnp.eye(4, dtype=w1_mat.dtype), w1_mat)   # (4*mid, 4*C_in) block-diag
    b1_col = jnp.tile(b1, 4).reshape(4 * mid, 1)               # (4*mid, 1)
    # (E, mid, 2, 2) -> (E, di, dj, mid) -> (E, 4*mid), column index = (di*2+dj)*mid + m
    w2_pack = jnp.transpose(w2, (0, 2, 3, 1)).reshape(embed_dim, 4 * mid)
    b2_col = b2.reshape(embed_dim, 1)

    TN = _choose_spatial_tile(N)
    n_tiles = N // TN

    out_flat = pl.pallas_call(
        _patch_encoding_kernel,
        out_shape=jax.ShapeDtypeStruct((B, embed_dim, N), jnp.float32),
        grid_spec=pltpu.PrefetchScalarGridSpec(
            num_scalar_prefetch=0,
            grid=(B, n_tiles),
            in_specs=[
                pl.BlockSpec((1, 4 * C_in, TN), lambda b, t: (b, 0, t)),
                pl.BlockSpec((4 * mid, 4 * C_in), lambda b, t: (0, 0)),
                pl.BlockSpec((4 * mid, 1), lambda b, t: (0, 0)),
                pl.BlockSpec((embed_dim, 4 * mid), lambda b, t: (0, 0)),
                pl.BlockSpec((embed_dim, 1), lambda b, t: (0, 0)),
            ],
            out_specs=pl.BlockSpec((1, embed_dim, TN), lambda b, t: (b, 0, t)),
        ),
        compiler_params=pltpu.CompilerParams(
            dimension_semantics=("parallel", "parallel"),
            vmem_limit_bytes=32 * 1024 * 1024,
        ),
    )(x_s2d, w1_bd, b1_col, w2_pack, b2_col)

    # output is already channel-major (NCHW-flat); only a metadata reshape remains
    return out_flat.reshape(B, embed_dim, Ho, Wo)


def _reference(x_nchw, w1, b1, w2, b2):
    # pure-JAX reference matching PyTorch semantics (NCHW / OIHW)
    y = lax.conv_general_dilated(
        x_nchw, w1, window_strides=(1, 1), padding="VALID",
        dimension_numbers=("NCHW", "OIHW", "NCHW"))
    y = y + b1.reshape(1, -1, 1, 1)
    y = jax.nn.gelu(y, approximate=False)
    y = lax.conv_general_dilated(
        y, w2, window_strides=(2, 2), padding="VALID",
        dimension_numbers=("NCHW", "OIHW", "NCHW"))
    y = y + b2.reshape(1, -1, 1, 1)
    return y


if __name__ == "__main__":
    # small shapes consistent with the module (patch_size=2 -> conv1 is 1x1/s1, conv2 is 2x2/s2)
    B, C_in, H, W = 2, 4, 16, 16
    embed_dim = 32
    mid = embed_dim // 2

    key = jax.random.PRNGKey(0)
    k_x, k_w1, k_b1, k_w2, k_b2 = jax.random.split(key, 5)

    x = jax.random.normal(k_x, (B, C_in, H, W), dtype=jnp.float32)

    # deterministic, torch-like (kaiming-uniform-scale) init
    fan1 = C_in * 1 * 1
    w1 = jax.random.uniform(k_w1, (mid, C_in, 1, 1), minval=-1.0, maxval=1.0) / math.sqrt(fan1)
    b1 = jax.random.uniform(k_b1, (mid,), minval=-1.0, maxval=1.0) / math.sqrt(fan1)
    fan2 = mid * 2 * 2
    w2 = jax.random.uniform(k_w2, (embed_dim, mid, 2, 2), minval=-1.0, maxval=1.0) / math.sqrt(fan2)
    b2 = jax.random.uniform(k_b2, (embed_dim,), minval=-1.0, maxval=1.0) / math.sqrt(fan2)

    out = patch_encoding_pallas(x, w1, b1, w2, b2)
    out = jax.block_until_ready(out)

    ref = jax.block_until_ready(_reference(x, w1, b1, w2, b2))
    assert out.shape == (B, embed_dim, H // 2, W // 2), out.shape
    assert jnp.allclose(out, ref, rtol=1e-4, atol=1e-4), float(jnp.max(jnp.abs(out - ref)))

    print("KERNEL_OK")
</pallas_src>

<mosaic_0001>
module attributes {stable_mosaic.version = 11 : i64} {
  func.func @_patch_encoding_kernel(%arg0: i32, %arg1: i32, %arg2: memref<1x16x64xf32, #tpu.memory_space<vmem>>, %arg3: memref<64x16xf32, #tpu.memory_space<vmem>>, %arg4: memref<64x1xf32, #tpu.memory_space<vmem>>, %arg5: memref<32x64xf32, #tpu.memory_space<vmem>>, %arg6: memref<32x1xf32, #tpu.memory_space<vmem>>, %arg7: memref<1x32x64xf32, #tpu.memory_space<vmem>>) attributes {dimension_semantics = [#tpu.dimension_semantics<parallel>, #tpu.dimension_semantics<parallel>], iteration_bounds = array<i64: 2, 1>, scalar_prefetch = 0 : i64, scratch_operands = 0 : i64, tpu.core_type = #tpu.core_type<tc>, window_params = [{transform_indices = @transform_0, window_bounds = array<i64: 1, 16, 64>}, {pipeline_mode = #tpu.pipeline_mode<synchronous>, transform_indices = @transform_1, window_bounds = array<i64: 64, 16>}, {pipeline_mode = #tpu.pipeline_mode<synchronous>, transform_indices = @transform_2, window_bounds = array<i64: 64, 1>}, {pipeline_mode = #tpu.pipeline_mode<synchronous>, transform_indices = @transform_3, window_bounds = array<i64: 32, 64>}, {pipeline_mode = #tpu.pipeline_mode<synchronous>, transform_indices = @transform_4, window_bounds = array<i64: 32, 1>}, {transform_indices = @transform_5, window_bounds = array<i64: 1, 32, 64>}]} {
    %c0 = arith.constant 0 : index
    %c0_0 = arith.constant 0 : index
    %c0_1 = arith.constant 0 : index
    %0 = vector.load %arg2[%c0, %c0_0, %c0_1] : memref<1x16x64xf32, #tpu.memory_space<vmem>>, vector<1x16x64xf32>
    %1 = vector.shape_cast %0 : vector<1x16x64xf32> to vector<16x64xf32>
    %c0_2 = arith.constant 0 : index
    %c0_3 = arith.constant 0 : index
    %2 = vector.load %arg3[%c0_2, %c0_3] : memref<64x16xf32, #tpu.memory_space<vmem>>, vector<64x16xf32>
    %cst = arith.constant dense<0.000000e+00> : vector<64x64xf32>
    %3 = tpu.matmul %2, %1, %cst {dimension_numbers = #tpu.dot_dimension_numbers<[1], [0], [0], [1], [0, 0, 1, 1], [], []>} : vector<64x16xf32>, vector<16x64xf32>, vector<64x64xf32> -> vector<64x64xf32>
    %c0_4 = arith.constant 0 : index
    %c0_5 = arith.constant 0 : index
    %4 = vector.load %arg4[%c0_4, %c0_5] : memref<64x1xf32, #tpu.memory_space<vmem>>, vector<64x1xf32>
    %5 = vector.broadcast %4 : vector<64x1xf32> to vector<64x64xf32>
    %6 = arith.addf %3, %5 : vector<64x64xf32>
    %cst_6 = arith.constant 5.000000e-01 : f32
    %7 = vector.broadcast %cst_6 : f32 to vector<64x64xf32>
    %8 = arith.mulf %7, %6 : vector<64x64xf32>
    %cst_7 = arith.constant 0.707106769 : f32
    %9 = vector.broadcast %cst_7 : f32 to vector<64x64xf32>
    %10 = arith.mulf %6, %9 : vector<64x64xf32>
    %11 = math.erf %10 : vector<64x64xf32>
    %cst_8 = arith.constant 1.000000e+00 : f32
    %12 = vector.broadcast %cst_8 : f32 to vector<64x64xf32>
    %13 = arith.addf %12, %11 : vector<64x64xf32>
    %14 = arith.mulf %8, %13 : vector<64x64xf32>
    %c0_9 = arith.constant 0 : index
    %c0_10 = arith.constant 0 : index
    %15 = vector.load %arg5[%c0_9, %c0_10] : memref<32x64xf32, #tpu.memory_space<vmem>>, vector<32x64xf32>
    %cst_11 = arith.constant dense<0.000000e+00> : vector<32x64xf32>
    %16 = tpu.matmul %15, %14, %cst_11 {dimension_numbers = #tpu.dot_dimension_numbers<[1], [0], [0], [1], [0, 0, 1, 1], [], []>} : vector<32x64xf32>, vector<64x64xf32>, vector<32x64xf32> -> vector<32x64xf32>
    %c0_12 = arith.constant 0 : index
    %c0_13 = arith.constant 0 : index
    %17 = vector.load %arg6[%c0_12, %c0_13] : memref<32x1xf32, #tpu.memory_space<vmem>>, vector<32x1xf32>
    %18 = vector.broadcast %17 : vector<32x1xf32> to vector<32x64xf32>
    %19 = arith.addf %16, %18 : vector<32x64xf32>
    %c0_14 = arith.constant 0 : index
    %c0_15 = arith.constant 0 : index
    %c0_16 = arith.constant 0 : index
    %20 = vector.load %arg7[%c0_14, %c0_15, %c0_16] : memref<1x32x64xf32, #tpu.memory_space<vmem>>, vector<1x32x64xf32>
    %21 = vector.shape_cast %20 : vector<1x32x64xf32> to vector<32x64xf32>
    %22 = vector.shape_cast %19 : vector<32x64xf32> to vector<1x32x64xf32>
    tpu.vector_store %arg7[%c0_14, %c0_15, %c0_16], %22 {strides = array<i32>} : memref<1x32x64xf32, #tpu.memory_space<vmem>>, vector<1x32x64xf32>,
    return
  }
  func.func @transform_0(%arg0: i32, %arg1: i32) -> (i32, i32, i32) {
    %c0_i32 = arith.constant 0 : i32
    %c0_i32_0 = arith.constant 0 : i32
    return %arg0, %c0_i32, %arg1 : i32, i32, i32
  }
  func.func @transform_1(%arg0: i32, %arg1: i32) -> (i32, i32) {
    %c0_i32 = arith.constant 0 : i32
    %c0_i32_0 = arith.constant 0 : i32
    %c0_i32_1 = arith.constant 0 : i32
    return %c0_i32, %c0_i32_0 : i32, i32
  }
  func.func @transform_2(%arg0: i32, %arg1: i32) -> (i32, i32) {
    %c0_i32 = arith.constant 0 : i32
    %c0_i32_0 = arith.constant 0 : i32
    %c0_i32_1 = arith.constant 0 : i32
    return %c0_i32, %c0_i32_0 : i32, i32
  }
  func.func @transform_3(%arg0: i32, %arg1: i32) -> (i32, i32) {
    %c0_i32 = arith.constant 0 : i32
    %c0_i32_0 = arith.constant 0 : i32
    %c0_i32_1 = arith.constant 0 : i32
    return %c0_i32, %c0_i32_0 : i32, i32
  }
  func.func @transform_4(%arg0: i32, %arg1: i32) -> (i32, i32) {
    %c0_i32 = arith.constant 0 : i32
    %c0_i32_0 = arith.constant 0 : i32
    %c0_i32_1 = arith.constant 0 : i32
    return %c0_i32, %c0_i32_0 : i32, i32
  }
  func.func @transform_5(%arg0: i32, %arg1: i32) -> (i32, i32, i32) {
    %c0_i32 = arith.constant 0 : i32
    %c0_i32_0 = arith.constant 0 : i32
    return %arg0, %c0_i32, %arg1 : i32, i32, i32
  }
}

</mosaic_0001>

<llo_original>
// kernel: tpu_custom_call.1
$region0: #{tpu_custom_call.1}
  #allocation0 [shape = 'u32[]', space=smem, size = 0x4, offset = 0x4, fixed_abs, tag = 'smem constant byte address 0x4 - core index']
  #allocation1 [shape = 'u32[72,128]{1,0:T(1,128)}', space=vmem, size = 0x9000, scoped, tag = 'internal scratch']
  %s0 = inlined_call_operand.vmem [shape: f32[2,16,64], index: 0, kind: input, shape index: {}]
  %s1 = inlined_call_operand.vmem [shape: f32[64,16], index: 1, kind: input, shape index: {}]
  %s2 = inlined_call_operand.vmem [shape: f32[64,1], index: 2, kind: input, shape index: {}]
  %s3 = inlined_call_operand.vmem [shape: f32[32,64], index: 3, kind: input, shape index: {}]
  %s4 = inlined_call_operand.vmem [shape: f32[32,1], index: 4, kind: input, shape index: {}]
  %s5 = inlined_call_operand.hbm [shape: f32[2,32,64], index: 5, kind: output, shape index: {}]
  %s6 = sld [smem:[#allocation0]]
  $region53: #{tpu_custom_call.1} parent=0
    _
  %s8 = ssub.s32 1, %s6
  %s9 = scalar_select 0, %s8, %s6
  $region1: #{tpu_custom_call.1} parent=0
    #allocation2 [shape = 'u8[32768]{0}', space=vmem, size = 0x8000, scoped, tag = 'output window, operand 0']
    #allocation3 [shape = 's32[2]{0}', space=sflag, size = 0x8, scoped, tag = 'scoped memory for tpu_custom_call.1']
    %10 = vsyncpa [#allocation3], 0
    %s11 = scalar_lea.sflag [#allocation3], 1
    %12 = vsyncpa %s11, 0
    loop: start=0, step=1, limit=4
    $region2: #{tpu_custom_call.1} parent=1 // loop_pre_header
      _
    $region3: #{tpu_custom_call.1} parent=1 // loop_header
      %s14 = sphi 0, %s18
      %p15 = scmp.ge.s32.totalorder %s14, 4
      %s21 = sphi 0, %s33
      %s22 = sphi 0, %s29
      %s23 = sphi 0, %s21
      %s24 = sphi 0, %s22
      %s25 = sphi 0, %s23
      %s26 = sphi 0, %s24
      %s38 = sphi 0, %s40
      %s41 = sphi 0, %s38
      %s42 = sphi 0, %s41
      %s58 = sphi 0, %s42
      %s62 = sphi 0, %s62
      %s64 = sphi 0, %s62
      %s65 = sphi 0, %s64
      %s79 = sphi 0, %s65
      %s83 = sphi 0, %s83
      %s85 = sphi 0, %s83
      %s86 = sphi 0, %s85
      %s100 = sphi 0, %s86
      %s104 = sphi 0, %s104
      %s106 = sphi 0, %s104
      %s107 = sphi 0, %s106
      %s121 = sphi 0, %s107
      %s125 = sphi 0, %s125
      %s127 = sphi 0, %s125
      %s128 = sphi 0, %s127
      %s142 = sphi 0, %s128
      %s150 = sphi 0, %s152
      %s153 = sphi 0, %s150
      %s154 = sphi 0, %s153
      %s170 = sphi 0, %s154
    $region4: #{tpu_custom_call.1} parent=1 // loop_header_branch
      %17 = sbr.rel (%p15) target = $region8
    $region5: #{tpu_custom_call.1} parent=1 // loop_body
      %s19 = ssub.s32 %s14, 1
      %s20 = ssub.s32 %s14, 2
      %s27 = sadd.s32 1, %s22
      %p28 = scmp.ge.s32.totalorder %s27, 1
      %s29 = scalar_select %p28, 0, %s27
      %s30 = sadd.s32 1, %s21
      %s31 = scalar_select %p28, %s30, %s21
      %p32 = scmp.ge.s32.totalorder %s31, 2
      %s33 = scalar_select %p32, 0, %s31
      %s34 = ssub.s32 %s21, %s33
      %s35 = ssub.s32 %s22, %s29
      %s36 = sor.u32 %s34, %s35
      %p37 = scmp.eq.s32.totalorder %s36, 0
      %s39 = sadd.s32 %s38, 1
      %s40 = scalar_select %p37, %s38, %s39
      %p43 = pneg %p37
      %p44 = scmp.eq.s32.totalorder %s14, 1
      %p45 = por %p43, %p44
      %p46 = scmp.ne.s32.totalorder %s38, %s41
      %p47 = scmp.eq.s32.totalorder %s14, 0
      %p48 = por %p46, %p47
      %p49 = scmp.ne.s32.totalorder %s38, %s41
      %p50 = scmp.eq.s32.totalorder %s19, 1
      %p51 = por %p49, %p50
      %p52 = scmp.ne.s32.totalorder %s41, %s42
      %p53 = scmp.eq.s32.totalorder %s19, 0
      %p54 = por %p52, %p53
      %p55 = scmp.ne.s32.totalorder %s41, %s42
      %p56 = scmp.eq.s32.totalorder %s20, 1
      %p57 = por %p55, %p56
      %p59 = scmp.ne.s32.totalorder %s42, %s58
      %p60 = scmp.eq.s32.totalorder %s20, 0
      %p61 = por %p59, %p60
      %s63 = sadd.s32 %s62, 1
      %p66 = scmp.eq.s32.totalorder %s14, 1
      %p67 = scmp.ne.s32.totalorder %s62, %s64
      %p68 = scmp.eq.s32.totalorder %s14, 0
      %p69 = por %p67, %p68
      %p70 = scmp.ne.s32.totalorder %s62, %s64
      %p71 = scmp.eq.s32.totalorder %s19, 1
      %p72 = por %p70, %p71
      %p73 = scmp.ne.s32.totalorder %s64, %s65
      %p74 = scmp.eq.s32.totalorder %s19, 0
      %p75 = por %p73, %p74
      %p76 = scmp.ne.s32.totalorder %s64, %s65
      %p77 = scmp.eq.s32.totalorder %s20, 1
      %p78 = por %p76, %p77
      %p80 = scmp.ne.s32.totalorder %s65, %s79
      %p81 = scmp.eq.s32.totalorder %s20, 0
      %p82 = por %p80, %p81
      %s84 = sadd.s32 %s83, 1
      %p87 = scmp.eq.s32.totalorder %s14, 1
      %p88 = scmp.ne.s32.totalorder %s83, %s85
      %p89 = scmp.eq.s32.totalorder %s14, 0
      %p90 = por %p88, %p89
      %p91 = scmp.ne.s32.totalorder %s83, %s85
      %p92 = scmp.eq.s32.totalorder %s19, 1
      %p93 = por %p91, %p92
      %p94 = scmp.ne.s32.totalorder %s85, %s86
      %p95 = scmp.eq.s32.totalorder %s19, 0
      %p96 = por %p94, %p95
      %p97 = scmp.ne.s32.totalorder %s85, %s86
      %p98 = scmp.eq.s32.totalorder %s20, 1
      %p99 = por %p97, %p98
      %p101 = scmp.ne.s32.totalorder %s86, %s100
      %p102 = scmp.eq.s32.totalorder %s20, 0
      %p103 = por %p101, %p102
      %s105 = sadd.s32 %s104, 1
      %p108 = scmp.eq.s32.totalorder %s14, 1
      %p109 = scmp.ne.s32.totalorder %s104, %s106
      %p110 = scmp.eq.s32.totalorder %s14, 0
      %p111 = por %p109, %p110
      %p112 = scmp.ne.s32.totalorder %s104, %s106
      %p113 = scmp.eq.s32.totalorder %s19, 1
      %p114 = por %p112, %p113
      %p115 = scmp.ne.s32.totalorder %s106, %s107
      %p116 = scmp.eq.s32.totalorder %s19, 0
      %p117 = por %p115, %p116
      %p118 = scmp.ne.s32.totalorder %s106, %s107
      %p119 = scmp.eq.s32.totalorder %s20, 1
      %p120 = por %p118, %p119
      %p122 = scmp.ne.s32.totalorder %s107, %s121
      %p123 = scmp.eq.s32.totalorder %s20, 0
      %p124 = por %p122, %p123
      %s126 = sadd.s32 %s125, 1
      %p129 = scmp.eq.s32.totalorder %s14, 1
      %p130 = scmp.ne.s32.totalorder %s125, %s127
      %p131 = scmp.eq.s32.totalorder %s14, 0
      %p132 = por %p130, %p131
      %p133 = scmp.ne.s32.totalorder %s125, %s127
      %p134 = scmp.eq.s32.totalorder %s19, 1
      %p135 = por %p133, %p134
      %p136 = scmp.ne.s32.totalorder %s127, %s128
      %p137 = scmp.eq.s32.totalorder %s19, 0
      %p138 = por %p136, %p137
      %p139 = scmp.ne.s32.totalorder %s127, %s128
      %p140 = scmp.eq.s32.totalorder %s20, 1
      %p141 = por %p139, %p140
      %p143 = scmp.ne.s32.totalorder %s128, %s142
      %p144 = scmp.eq.s32.totalorder %s20, 0
      %p145 = por %p143, %p144
      %s146 = ssub.s32 %s21, %s33
      %s147 = ssub.s32 %s22, %s29
      %s148 = sor.u32 %s146, %s147
      %p149 = scmp.eq.s32.totalorder %s148, 0
      %s151 = sadd.s32 %s150, 1
      %s152 = scalar_select %p149, %s150, %s151
      %p155 = pneg %p149
      %p156 = scmp.eq.s32.totalorder %s14, 1
      %p157 = por %p155, %p156
      %p158 = scmp.ne.s32.totalorder %s150, %s153
      %p159 = scmp.eq.s32.totalorder %s14, 0
      %p160 = por %p158, %p159
      %p161 = scmp.ne.s32.totalorder %s150, %s153
      %p162 = scmp.eq.s32.totalorder %s19, 1
      %p163 = por %p161, %p162
      %p164 = scmp.ne.s32.totalorder %s153, %s154
      %p165 = scmp.eq.s32.totalorder %s19, 0
      %p166 = por %p164, %p165
      %p167 = scmp.ne.s32.totalorder %s153, %s154
      %p168 = scmp.eq.s32.totalorder %s20, 1
      %p169 = por %p167, %p168
      %p171 = scmp.ne.s32.totalorder %s154, %s170
      %p172 = scmp.eq.s32.totalorder %s20, 0
      %p173 = por %p171, %p172
      %p174 = scmp.le.s32.totalorder 1, %s14
      %p175 = scmp.lt.s32.totalorder %s14, 3
      %p176 = pnand %p174, %p175
      %p177 = pneg %p176
      // Predicated region
      $region9: #{tpu_custom_call.1} parent=5 // pred_check
        _
      $region10: #{tpu_custom_call.1} parent=5 // pred_check_branch
        %179 = sbr.rel (%p176) target = $region12
      $region11: #{tpu_custom_call.1} parent=5 // pred_region
        %s180 = ssub.s32 %s14, 1
        // Predicated region
        $region13: #{tpu_custom_call.1} parent=11 // pred_check
          %p181 = pneg %p75
        $region14: #{tpu_custom_call.1} parent=11 // pred_check_branch
          %183 = sbr.rel (%p181) target = $region16
        $region15: #{tpu_custom_call.1} parent=11 // pred_region
          _
        $region16: #{tpu_custom_call.1} parent=11 // pred_fallthru
          _
        // Predicated region
        $region17: #{tpu_custom_call.1} parent=11 // pred_check
          %p184 = pneg %p96
        $region18: #{tpu_custom_call.1} parent=11 // pred_check_branch
          %186 = sbr.rel (%p184) target = $region20
        $region19: #{tpu_custom_call.1} parent=11 // pred_region
          _
        $region20: #{tpu_custom_call.1} parent=11 // pred_fallthru
          _
        // Predicated region
        $region21: #{tpu_custom_call.1} parent=11 // pred_check
          %p187 = pneg %p117
        $region22: #{tpu_custom_call.1} parent=11 // pred_check_branch
          %189 = sbr.rel (%p187) target = $region24
        $region23: #{tpu_custom_call.1} parent=11 // pred_region
          _
        $region24: #{tpu_custom_call.1} parent=11 // pred_fallthru
          _
        // Predicated region
        $region25: #{tpu_custom_call.1} parent=11 // pred_check
          %p190 = pneg %p138
        $region26: #{tpu_custom_call.1} parent=11 // pred_check_branch
          %192 = sbr.rel (%p190) target = $region28
        $region27: #{tpu_custom_call.1} parent=11 // pred_region
          _
        $region28: #{tpu_custom_call.1} parent=11 // pred_fallthru
          _
      $region12: #{tpu_custom_call.1} parent=5 // pred_fallthru
        _
      %p193 = scmp.lt.s32.totalorder %s14, 2
      // Predicated region
      $region29: #{tpu_custom_call.1} parent=5 // pred_check
        %p194 = pneg %p193
      $region30: #{tpu_custom_call.1} parent=5 // pred_check_branch
        %196 = sbr.rel (%p194) target = $region32
      $region31: #{tpu_custom_call.1} parent=5 // pred_region
        // Predicated region
        $region33: #{tpu_custom_call.1} parent=31 // pred_check
          %p197 = pneg %p48
        $region34: #{tpu_custom_call.1} parent=31 // pred_check_branch
          %199 = sbr.rel (%p197) target = $region36
        $region35: #{tpu_custom_call.1} parent=31 // pred_region
          %p200 = scmp.lt.s32.totalorder %s21, 1
          %s201 = scalar_select %p200, %s21, 1
          %p202 = scmp.lt.s32.totalorder %s22, 0
          %s203 = scalar_select %p202, %s22, 0
          %s204 = smul.addr %s201, 2
          %s205 = sadd.s32 %s203, %s204
          %s206 = smul.addr %s205, 8
          %s207 = scalar_lea.vmem %s0, %s206
        $region36: #{tpu_custom_call.1} parent=31 // pred_fallthru
          _
      $region32: #{tpu_custom_call.1} parent=5 // pred_fallthru
        _
      %p208 = scmp.le.s32.totalorder 1, %s14
      %p209 = scmp.lt.s32.totalorder %s14, 3
      %p210 = pnand %p208, %p209
      %p211 = pneg %p210
      // Predicated region
      $region37: #{tpu_custom_call.1} parent=5 // pred_check
        _
      $region38: #{tpu_custom_call.1} parent=5 // pred_check_branch
        %213 = sbr.rel (%p210) target = $region40
      $region39: #{tpu_custom_call.1} parent=5 // pred_region
        %s214 = ssub.s32 %s14, 1
        %p215 = scmp.lt.s32.totalorder %s23, 1
        %s216 = scalar_select %p215, %s23, 1
        %p217 = scmp.lt.s32.totalorder %s24, 0
        %s218 = scalar_select %p217, %s24, 0
        %s219 = smul.addr %s216, 2
        %s220 = sadd.s32 %s218, %s219
        %s221 = smul.addr %s220, 8
        %s222 = scalar_lea.vmem %s0, %s221
        %p223 = pneg %p54
        %p224 = pneg %p51
        %p225 = pneg %p75
        %p226 = pneg %p72
        %p227 = pneg %p96
        %p228 = pneg %p93
        %p229 = pneg %p117
        %p230 = pneg %p114
        %p231 = pneg %p138
        %p232 = pneg %p135
        %p233 = pneg %p166
        %p234 = pneg %p163
        %s235 = sand.u32 %s153, 1
        %s236 = scalar_lea.sflag [#allocation3], %s235
        %s237 = sand.u32 %s153, 1
        %s238 = smul.addr %s237, 32
        %s239 = scalar_lea.vmem [#allocation2], %s238
        %p240 = scmp.lt.s32.totalorder %s23, 1
        %s241 = scalar_select %p240, %s23, 1
        %p242 = scmp.lt.s32.totalorder %s24, 0
        %s243 = scalar_select %p242, %s24, 0
        %s244 = smul.addr %s241, 2
        %s245 = sadd.s32 %s243, %s244
        %s246 = smul.addr %s245, 8
        %s247 = scalar_lea.vmem %s0, %s246
        %v248 = vld [vmem:[%s247] sm:$0xff]
        %v249 = vld [vmem:[%s247 + $0x8] sm:$0xff]
        %v250 = vld [vmem:[%s1] sm:$0xff]
        %v251 = vld [vmem:[%s1 + $0x8] sm:$0xff]
        %v252 = vld [vmem:[%s1 + $0x10] sm:$0xff]
        %v253 = vld [vmem:[%s1 + $0x18] sm:$0xff]
        %v254 = vld [vmem:[%s1 + $0x20] sm:$0xff]
        %v255 = vld [vmem:[%s1 + $0x28] sm:$0xff]
        %v256 = vld [vmem:[%s1 + $0x30] sm:$0xff]
        %v257 = vld [vmem:[%s1 + $0x38] sm:$0xff]
        %v258 = vld [vmem:[%s2] sm:$0xff]
        %v259 = vld [vmem:[%s2 + $0x8] sm:$0xff]
        %v260 = vld [vmem:[%s2 + $0x10] sm:$0xff]
        %v261 = vld [vmem:[%s2 + $0x18] sm:$0xff]
        %v262 = vld [vmem:[%s2 + $0x20] sm:$0xff]
        %v263 = vld [vmem:[%s2 + $0x28] sm:$0xff]
        %v264 = vld [vmem:[%s2 + $0x30] sm:$0xff]
        %v265 = vld [vmem:[%s2 + $0x38] sm:$0xff]
        %267 = vset.pattern.permute.xlu0 0
        %268 = vperm.xlu0 %267, %v258
        %v269 = vpop.permute.xlu0 %268
        %272 = vset.pattern.permute.xlu0 0
        %273 = vperm.xlu0 %272, %v259
        %v274 = vpop.permute.xlu0 %273
        %277 = vset.pattern.permute.xlu0 0
        %278 = vperm.xlu0 %277, %v260
        %v279 = vpop.permute.xlu0 %278
        %282 = vset.pattern.permute.xlu0 0
        %283 = vperm.xlu0 %282, %v261
        %v284 = vpop.permute.xlu0 %283
        %287 = vset.pattern.permute.xlu0 0
        %288 = vperm.xlu0 %287, %v262
        %v289 = vpop.permute.xlu0 %288
        %292 = vset.pattern.permute.xlu0 0
        %293 = vperm.xlu0 %292, %v263
        %v294 = vpop.permute.xlu0 %293
        %297 = vset.pattern.permute.xlu0 0
        %298 = vperm.xlu0 %297, %v264
        %v299 = vpop.permute.xlu0 %298
        %302 = vset.pattern.permute.xlu0 0
        %303 = vperm.xlu0 %302, %v265
        %v304 = vpop.permute.xlu0 %303
        %vm306 = vcmask 130048
        %v308 = vsel %vm306, %v250, 0
        %v311 = vsel %vm306, %v251, 0
        %v314 = vsel %vm306, %v252, 0
        %v317 = vsel %vm306, %v253, 0
        %v320 = vsel %vm306, %v254, 0
        %v323 = vsel %vm306, %v255, 0
        %v326 = vsel %vm306, %v256, 0
        %v329 = vsel %vm306, %v257, 0
        %331 = vmatpush.msra.mxu0 0.0
        %332 = vmatpush.msra.mxu0 0.0
        %333 = vmatpush.msra.mxu0 0.0
        %334 = vmatpush.msra.mxu0 0.0
        %335 = vmatpush.msra.mxu0 0.0
        %336 = vmatpush.msra.mxu0 0.0
        %337 = vmatpush.msra.mxu0 0.0
        %338 = vmatpush.msra.mxu0 0.0
        %339 = vmatpush.msra.mxu0 0.0
        %340 = vmatpush.msra.mxu0 0.0
        %341 = vmatpush.msra.mxu0 0.0
        %342 = vmatpush.msra.mxu0 0.0
        %343 = vmatpush.msra.mxu0 0.0
        %344 = vmatpush.msra.mxu0 0.0
        %345 = vmatpush.msra.mxu0 %v249
        %346 = vmatpush.msra.mxu0 %v248
        %347 = vmatmul.f32.gmra.mxu0 %v308
        %v348 = vpop.f32.mrf.mxu0
        %v349 = vadd.f32 %v269, %v348
        %350 = vmatmul.f32.gmra.mxu0 %v311
        %v351 = vpop.f32.mrf.mxu0
        %v352 = vadd.f32 %v274, %v351
        %353 = vmatmul.f32.gmra.mxu0 %v314
        %v354 = vpop.f32.mrf.mxu0
        %v355 = vadd.f32 %v279, %v354
        %356 = vmatmul.f32.gmra.mxu0 %v317
        %v357 = vpop.f32.mrf.mxu0
        %v358 = vadd.f32 %v284, %v357
        %359 = vmatmul.f32.gmra.mxu0 %v320
        %v360 = vpop.f32.mrf.mxu0
        %v361 = vadd.f32 %v289, %v360
        %362 = vmatmul.f32.gmra.mxu0 %v323
        %v363 = vpop.f32.mrf.mxu0
        %v364 = vadd.f32 %v294, %v363
        %365 = vmatmul.f32.gmra.mxu0 %v326
        %v366 = vpop.f32.mrf.mxu0
        %v367 = vadd.f32 %v299, %v366
        %368 = vmatmul.f32.gmra.mxu0 %v329
        %v369 = vpop.f32.mrf.mxu0
        %v370 = vadd.f32 %v304, %v369
        %371 = vdwg.mxu0
        %v372 = vmul.f32 %v349, 0.5
        %v373 = vmul.f32 %v352, 0.5
        %v374 = vmul.f32 %v355, 0.5
        %v375 = vmul.f32 %v358, 0.5
        %v376 = vmul.f32 %v361, 0.5
        %v377 = vmul.f32 %v364, 0.5
        %v378 = vmul.f32 %v367, 0.5
        %v379 = vmul.f32 %v370, 0.5
        %v380 = vmul.f32 %v349, 0.70710677
        %v381 = vmul.f32 %v352, 0.70710677
        %v382 = vmul.f32 %v355, 0.70710677
        %v383 = vmul.f32 %v358, 0.70710677
        %v384 = vmul.f32 %v361, 0.70710677
        %v385 = vmul.f32 %v364, 0.70710677
        %v386 = vmul.f32 %v367, 0.70710677
        %v387 = vmul.f32 %v370, 0.70710677
        %v388 = vmul.f32 %v380, %v380
        %v389 = vmin.f32 16.0, %v388
        %v390 = vmul.f32 %v389, 2.1237322e-06
        %v391 = vadd.f32 %v390, 0.00028619796
        %v392 = vmul.f32 %v389, %v391
        %v393 = vadd.f32 %v392, 0.0036580483
        %v394 = vmul.f32 %v389, %v393
        %v395 = vadd.f32 %v394, 0.05243302
        %v396 = vmul.f32 %v389, %v395
        %v397 = vadd.f32 %v396, 0.18741608
        %v398 = vmul.f32 %v389, %v397
        %v399 = vadd.f32 %v398, 1.1283791
        %v400 = vmul.f32 %v380, %v399
        %v401 = vmul.f32 %v389, 3.8918573e-05
        %v402 = vadd.f32 %v401, 0.001143296
        %v403 = vmul.f32 %v389, %v402
        %v404 = vadd.f32 %v403, 0.014752088
        %v405 = vmul.f32 %v389, %v404
        %v406 = vadd.f32 %v405, 0.112945676
        %v407 = vmul.f32 %v389, %v406
        %v408 = vadd.f32 %v407, 0.4994258
        %v409 = vmul.f32 %v389, %v408
        %v410 = vadd.f32 %v409, 1.0
        %v411 = vrcp.pop %v410
        %v412 = vmul.f32 %v410, %v411
        %v413 = vsub.f32 1.0, %v412
        %v414 = vmul.f32 %v411, %v413
        %v415 = vadd.f32 %v411, %v414
        %vm416 = vweird.f32 %v410
        %vm417 = vweird.f32 %v411
        %vm418 = vmor %vm416, %vm417
        %v419 = vsel %vm418, %v411, %v415
        %v420 = vand.u32 2147483647, %v410
        %vm421 = vcmp.eq.f32.partialorder %v420, 8.507059e+37
        %v422 = vand.u32 %v410, 2147483648
        %v423 = vor.u32 1.1754944e-38, %v422
        %v424 = vsel %vm421, %v423, %v419
        %v425 = vmul.f32 %v400, %v424
        %v426 = vmin.f32 %v425, 1.0
        %v427 = vmax.f32 %v426, -1.0
        %v428 = vmul.f32 %v381, %v381
        %v429 = vmin.f32 16.0, %v428
        %v430 = vmul.f32 %v429, 2.1237322e-06
        %v431 = vadd.f32 %v430, 0.00028619796
        %v432 = vmul.f32 %v429, %v431
        %v433 = vadd.f32 %v432, 0.0036580483
        %v434 = vmul.f32 %v429, %v433
        %v435 = vadd.f32 %v434, 0.05243302
        %v436 = vmul.f32 %v429, %v435
        %v437 = vadd.f32 %v436, 0.18741608
        %v438 = vmul.f32 %v429, %v437
        %v439 = vadd.f32 %v438, 1.1283791
        %v440 = vmul.f32 %v381, %v439
        %v441 = vmul.f32 %v429, 3.8918573e-05
        %v442 = vadd.f32 %v441, 0.001143296
        %v443 = vmul.f32 %v429, %v442
        %v444 = vadd.f32 %v443, 0.014752088
        %v445 = vmul.f32 %v429, %v444
        %v446 = vadd.f32 %v445, 0.112945676
        %v447 = vmul.f32 %v429, %v446
        %v448 = vadd.f32 %v447, 0.4994258
        %v449 = vmul.f32 %v429, %v448
        %v450 = vadd.f32 %v449, 1.0
        %v451 = vrcp.pop %v450
        %v452 = vmul.f32 %v450, %v451
        %v453 = vsub.f32 1.0, %v452
        %v454 = vmul.f32 %v451, %v453
        %v455 = vadd.f32 %v451, %v454
        %vm456 = vweird.f32 %v450
        %vm457 = vweird.f32 %v451
        %vm458 = vmor %vm456, %vm457
        %v459 = vsel %vm458, %v451, %v455
        %v460 = vand.u32 2147483647, %v450
        %vm461 = vcmp.eq.f32.partialorder %v460, 8.507059e+37
        %v462 = vand.u32 %v450, 2147483648
        %v463 = vor.u32 1.1754944e-38, %v462
        %v464 = vsel %vm461, %v463, %v459
        %v465 = vmul.f32 %v440, %v464
        %v466 = vmin.f32 %v465, 1.0
        %v467 = vmax.f32 %v466, -1.0
        %v468 = vmul.f32 %v382, %v382
        %v469 = vmin.f32 16.0, %v468
        %v470 = vmul.f32 %v469, 2.1237322e-06
        %v471 = vadd.f32 %v470, 0.00028619796
        %v472 = vmul.f32 %v469, %v471
        %v473 = vadd.f32 %v472, 0.0036580483
        %v474 = vmul.f32 %v469, %v473
        %v475 = vadd.f32 %v474, 0.05243302
        %v476 = vmul.f32 %v469, %v475
        %v477 = vadd.f32 %v476, 0.18741608
        %v478 = vmul.f32 %v469, %v477
        %v479 = vadd.f32 %v478, 1.1283791
        %v480 = vmul.f32 %v382, %v479
        %v481 = vmul.f32 %v469, 3.8918573e-05
        %v482 = vadd.f32 %v481, 0.001143296
        %v483 = vmul.f32 %v469, %v482
        %v484 = vadd.f32 %v483, 0.014752088
        %v485 = vmul.f32 %v469, %v484
        %v486 = vadd.f32 %v485, 0.112945676
        %v487 = vmul.f32 %v469, %v486
        %v488 = vadd.f32 %v487, 0.4994258
        %v489 = vmul.f32 %v469, %v488
        %v490 = vadd.f32 %v489, 1.0
        %v491 = vrcp.pop %v490
        %v492 = vmul.f32 %v490, %v491
        %v493 = vsub.f32 1.0, %v492
        %v494 = vmul.f32 %v491, %v493
        %v495 = vadd.f32 %v491, %v494
        %vm496 = vweird.f32 %v490
        %vm497 = vweird.f32 %v491
        %vm498 = vmor %vm496, %vm497
        %v499 = vsel %vm498, %v491, %v495
        %v500 = vand.u32 2147483647, %v490
        %vm501 = vcmp.eq.f32.partialorder %v500, 8.507059e+37
        %v502 = vand.u32 %v490, 2147483648
        %v503 = vor.u32 1.1754944e-38, %v502
        %v504 = vsel %vm501, %v503, %v499
        %v505 = vmul.f32 %v480, %v504
        %v506 = vmin.f32 %v505, 1.0
        %v507 = vmax.f32 %v506, -1.0
        %v508 = vmul.f32 %v383, %v383
        %v509 = vmin.f32 16.0, %v508
        %v510 = vmul.f32 %v509, 2.1237322e-06
        %v511 = vadd.f32 %v510, 0.00028619796
        %v512 = vmul.f32 %v509, %v511
        %v513 = vadd.f32 %v512, 0.0036580483
        %v514 = vmul.f32 %v509, %v513
        %v515 = vadd.f32 %v514, 0.05243302
        %v516 = vmul.f32 %v509, %v515
        %v517 = vadd.f32 %v516, 0.18741608
        %v518 = vmul.f32 %v509, %v517
        %v519 = vadd.f32 %v518, 1.1283791
        %v520 = vmul.f32 %v383, %v519
        %v521 = vmul.f32 %v509, 3.8918573e-05
        %v522 = vadd.f32 %v521, 0.001143296
        %v523 = vmul.f32 %v509, %v522
        %v524 = vadd.f32 %v523, 0.014752088
        %v525 = vmul.f32 %v509, %v524
        %v526 = vadd.f32 %v525, 0.112945676
        %v527 = vmul.f32 %v509, %v526
        %v528 = vadd.f32 %v527, 0.4994258
        %v529 = vmul.f32 %v509, %v528
        %v530 = vadd.f32 %v529, 1.0
        %v531 = vrcp.pop %v530
        %v532 = vmul.f32 %v530, %v531
        %v533 = vsub.f32 1.0, %v532
        %v534 = vmul.f32 %v531, %v533
        %v535 = vadd.f32 %v531, %v534
        %vm536 = vweird.f32 %v530
        %vm537 = vweird.f32 %v531
        %vm538 = vmor %vm536, %vm537
        %v539 = vsel %vm538, %v531, %v535
        %v540 = vand.u32 2147483647, %v530
        %vm541 = vcmp.eq.f32.partialorder %v540, 8.507059e+37
        %v542 = vand.u32 %v530, 2147483648
        %v543 = vor.u32 1.1754944e-38, %v542
        %v544 = vsel %vm541, %v543, %v539
        %v545 = vmul.f32 %v520, %v544
        %v546 = vmin.f32 %v545, 1.0
        %v547 = vmax.f32 %v546, -1.0
        %v548 = vmul.f32 %v384, %v384
        %v549 = vmin.f32 16.0, %v548
        %v550 = vmul.f32 %v549, 2.1237322e-06
        %v551 = vadd.f32 %v550, 0.00028619796
        %v552 = vmul.f32 %v549, %v551
        %v553 = vadd.f32 %v552, 0.0036580483
        %v554 = vmul.f32 %v549, %v553
        %v555 = vadd.f32 %v554, 0.05243302
        %v556 = vmul.f32 %v549, %v555
        %v557 = vadd.f32 %v556, 0.18741608
        %v558 = vmul.f32 %v549, %v557
        %v559 = vadd.f32 %v558, 1.1283791
        %v560 = vmul.f32 %v384, %v559
        %v561 = vmul.f32 %v549, 3.8918573e-05
        %v562 = vadd.f32 %v561, 0.001143296
        %v563 = vmul.f32 %v549, %v562
        %v564 = vadd.f32 %v563, 0.014752088
        %v565 = vmul.f32 %v549, %v564
        %v566 = vadd.f32 %v565, 0.112945676
        %v567 = vmul.f32 %v549, %v566
        %v568 = vadd.f32 %v567, 0.4994258
        %v569 = vmul.f32 %v549, %v568
        %v570 = vadd.f32 %v569, 1.0
        %v571 = vrcp.pop %v570
        %v572 = vmul.f32 %v570, %v571
        %v573 = vsub.f32 1.0, %v572
        %v574 = vmul.f32 %v571, %v573
        %v575 = vadd.f32 %v571, %v574
        %vm576 = vweird.f32 %v570
        %vm577 = vweird.f32 %v571
        %vm578 = vmor %vm576, %vm577
        %v579 = vsel %vm578, %v571, %v575
        %v580 = vand.u32 2147483647, %v570
        %vm581 = vcmp.eq.f32.partialorder %v580, 8.507059e+37
        %v582 = vand.u32 %v570, 2147483648
        %v583 = vor.u32 1.1754944e-38, %v582
        %v584 = vsel %vm581, %v583, %v579
        %v585 = vmul.f32 %v560, %v584
        %v586 = vmin.f32 %v585, 1.0
        %v587 = vmax.f32 %v586, -1.0
        %v588 = vmul.f32 %v385, %v385
        %v589 = vmin.f32 16.0, %v588
        %v590 = vmul.f32 %v589, 2.1237322e-06
        %v591 = vadd.f32 %v590, 0.00028619796
        %v592 = vmul.f32 %v589, %v591
        %v593 = vadd.f32 %v592, 0.0036580483
        %v594 = vmul.f32 %v589, %v593
        %v595 = vadd.f32 %v594, 0.05243302
        %v596 = vmul.f32 %v589, %v595
        %v597 = vadd.f32 %v596, 0.18741608
        %v598 = vmul.f32 %v589, %v597
        %v599 = vadd.f32 %v598, 1.1283791
        %v600 = vmul.f32 %v385, %v599
        %v601 = vmul.f32 %v589, 3.8918573e-05
        %v602 = vadd.f32 %v601, 0.001143296
        %v603 = vmul.f32 %v589, %v602
        %v604 = vadd.f32 %v603, 0.014752088
        %v605 = vmul.f32 %v589, %v604
        %v606 = vadd.f32 %v605, 0.112945676
        %v607 = vmul.f32 %v589, %v606
        %v608 = vadd.f32 %v607, 0.4994258
        %v609 = vmul.f32 %v589, %v608
        %v610 = vadd.f32 %v609, 1.0
        %v611 = vrcp.pop %v610
        %v612 = vmul.f32 %v610, %v611
        %v613 = vsub.f32 1.0, %v612
        %v614 = vmul.f32 %v611, %v613
        %v615 = vadd.f32 %v611, %v614
        %vm616 = vweird.f32 %v610
        %vm617 = vweird.f32 %v611
        %vm618 = vmor %vm616, %vm617
        %v619 = vsel %vm618, %v611, %v615
        %v620 = vand.u32 2147483647, %v610
        %vm621 = vcmp.eq.f32.partialorder %v620, 8.507059e+37
        %v622 = vand.u32 %v610, 2147483648
        %v623 = vor.u32 1.1754944e-38, %v622
        %v624 = vsel %vm621, %v623, %v619
        %v625 = vmul.f32 %v600, %v624
        %v626 = vmin.f32 %v625, 1.0
        %v627 = vmax.f32 %v626, -1.0
        %v628 = vmul.f32 %v386, %v386
        %v629 = vmin.f32 16.0, %v628
        %v630 = vmul.f32 %v629, 2.1237322e-06
        %v631 = vadd.f32 %v630, 0.00028619796
        %v632 = vmul.f32 %v629, %v631
        %v633 = vadd.f32 %v632, 0.0036580483
        %v634 = vmul.f32 %v629, %v633
        %v635 = vadd.f32 %v634, 0.05243302
        %v636 = vmul.f32 %v629, %v635
        %v637 = vadd.f32 %v636, 0.18741608
        %v638 = vmul.f32 %v629, %v637
        %v639 = vadd.f32 %v638, 1.1283791
        %v640 = vmul.f32 %v386, %v639
        %v641 = vmul.f32 %v629, 3.8918573e-05
        %v642 = vadd.f32 %v641, 0.001143296
        %v643 = vmul.f32 %v629, %v642
        %v644 = vadd.f32 %v643, 0.014752088
        %v645 = vmul.f32 %v629, %v644
        %v646 = vadd.f32 %v645, 0.112945676
        %v647 = vmul.f32 %v629, %v646
        %v648 = vadd.f32 %v647, 0.4994258
        %v649 = vmul.f32 %v629, %v648
        %v650 = vadd.f32 %v649, 1.0
        %v651 = vrcp.pop %v650
        %v652 = vmul.f32 %v650, %v651
        %v653 = vsub.f32 1.0, %v652
        %v654 = vmul.f32 %v651, %v653
        %v655 = vadd.f32 %v651, %v654
        %vm656 = vweird.f32 %v650
        %vm657 = vweird.f32 %v651
        %vm658 = vmor %vm656, %vm657
        %v659 = vsel %vm658, %v651, %v655
        %v660 = vand.u32 2147483647, %v650
        %vm661 = vcmp.eq.f32.partialorder %v660, 8.507059e+37
        %v662 = vand.u32 %v650, 2147483648
        %v663 = vor.u32 1.1754944e-38, %v662
        %v664 = vsel %vm661, %v663, %v659
        %v665 = vmul.f32 %v640, %v664
        %v666 = vmin.f32 %v665, 1.0
        %v667 = vmax.f32 %v666, -1.0
        %v668 = vmul.f32 %v387, %v387
        %v669 = vmin.f32 16.0, %v668
        %v670 = vmul.f32 %v669, 2.1237322e-06
        %v671 = vadd.f32 %v670, 0.00028619796
        %v672 = vmul.f32 %v669, %v671
        %v673 = vadd.f32 %v672, 0.0036580483
        %v674 = vmul.f32 %v669, %v673
        %v675 = vadd.f32 %v674, 0.05243302
        %v676 = vmul.f32 %v669, %v675
        %v677 = vadd.f32 %v676, 0.18741608
        %v678 = vmul.f32 %v669, %v677
        %v679 = vadd.f32 %v678, 1.1283791
        %v680 = vmul.f32 %v387, %v679
        %v681 = vmul.f32 %v669, 3.8918573e-05
        %v682 = vadd.f32 %v681, 0.001143296
        %v683 = vmul.f32 %v669, %v682
        %v684 = vadd.f32 %v683, 0.014752088
        %v685 = vmul.f32 %v669, %v684
        %v686 = vadd.f32 %v685, 0.112945676
        %v687 = vmul.f32 %v669, %v686
        %v688 = vadd.f32 %v687, 0.4994258
        %v689 = vmul.f32 %v669, %v688
        %v690 = vadd.f32 %v689, 1.0
        %v691 = vrcp.pop %v690
        %v692 = vmul.f32 %v690, %v691
        %v693 = vsub.f32 1.0, %v692
        %v694 = vmul.f32 %v691, %v693
        %v695 = vadd.f32 %v691, %v694
        %vm696 = vweird.f32 %v690
        %vm697 = vweird.f32 %v691
        %vm698 = vmor %vm696, %vm697
        %v699 = vsel %vm698, %v691, %v695
        %v700 = vand.u32 2147483647, %v690
        %vm701 = vcmp.eq.f32.partialorder %v700, 8.507059e+37
        %v702 = vand.u32 %v690, 2147483648
        %v703 = vor.u32 1.1754944e-38, %v702
        %v704 = vsel %vm701, %v703, %v699
        %v705 = vmul.f32 %v680, %v704
        %v706 = vmin.f32 %v705, 1.0
        %v707 = vmax.f32 %v706, -1.0
        %v708 = vadd.f32 %v427, 1.0
        %v709 = vadd.f32 %v467, 1.0
        %v710 = vadd.f32 %v507, 1.0
        %v711 = vadd.f32 %v547, 1.0
        %v712 = vadd.f32 %v587, 1.0
        %v713 = vadd.f32 %v627, 1.0
        %v714 = vadd.f32 %v667, 1.0
        %v715 = vadd.f32 %v707, 1.0
        %v716 = vmul.f32 %v372, %v708
        %v717 = vmul.f32 %v373, %v709
        %v718 = vmul.f32 %v374, %v710
        %v719 = vmul.f32 %v375, %v711
        %v720 = vmul.f32 %v376, %v712
        %v721 = vmul.f32 %v377, %v713
        %v722 = vmul.f32 %v378, %v714
        %v723 = vmul.f32 %v379, %v715
        %v724 = vld [vmem:[%s3] sm:$0xff]
        %v725 = vld [vmem:[%s3 + $0x8] sm:$0xff]
        %v726 = vld [vmem:[%s3 + $0x10] sm:$0xff]
        %v727 = vld [vmem:[%s3 + $0x18] sm:$0xff]
        %v728 = vld [vmem:[%s4] sm:$0xff]
        %v729 = vld [vmem:[%s4 + $0x8] sm:$0xff]
        %v730 = vld [vmem:[%s4 + $0x10] sm:$0xff]
        %v731 = vld [vmem:[%s4 + $0x18] sm:$0xff]
        %733 = vset.pattern.permute.xlu0 0
        %734 = vperm.xlu0 %733, %v728
        %v735 = vpop.permute.xlu0 %734
        %738 = vset.pattern.permute.xlu0 0
        %739 = vperm.xlu0 %738, %v729
        %v740 = vpop.permute.xlu0 %739
        %743 = vset.pattern.permute.xlu0 0
        %744 = vperm.xlu0 %743, %v730
        %v745 = vpop.permute.xlu0 %744
        %748 = vset.pattern.permute.xlu0 0
        %749 = vperm.xlu0 %748, %v731
        %v750 = vpop.permute.xlu0 %749
        %vm752 = vcmask 523264
        %v754 = vsel %vm752, %v724, 0
        %v757 = vsel %vm752, %v725, 0
        %v760 = vsel %vm752, %v726, 0
        %v763 = vsel %vm752, %v727, 0
        %765 = vmatpush.msra.mxu0 0.0
        %766 = vmatpush.msra.mxu0 0.0
        %767 = vmatpush.msra.mxu0 0.0
        %768 = vmatpush.msra.mxu0 0.0
        %769 = vmatpush.msra.mxu0 0.0
        %770 = vmatpush.msra.mxu0 0.0
        %771 = vmatpush.msra.mxu0 0.0
        %772 = vmatpush.msra.mxu0 0.0
        %773 = vmatpush.msra.mxu0 %v723
        %774 = vmatpush.msra.mxu0 %v722
        %775 = vmatpush.msra.mxu0 %v721
        %776 = vmatpush.msra.mxu0 %v720
        %777 = vmatpush.msra.mxu0 %v719
        %778 = vmatpush.msra.mxu0 %v718
        %779 = vmatpush.msra.mxu0 %v717
        %780 = vmatpush.msra.mxu0 %v716
        %781 = vmatmul.f32.gmra.mxu0 %v754
        %v782 = vpop.f32.mrf.mxu0
        %v783 = vadd.f32 %v735, %v782
        %784 = vmatmul.f32.gmra.mxu0 %v757
        %v785 = vpop.f32.mrf.mxu0
        %v786 = vadd.f32 %v740, %v785
        %787 = vmatmul.f32.gmra.mxu0 %v760
        %v788 = vpop.f32.mrf.mxu0
        %v789 = vadd.f32 %v745, %v788
        %790 = vmatmul.f32.gmra.mxu0 %v763
        %v791 = vpop.f32.mrf.mxu0
        %v792 = vadd.f32 %v750, %v791
        %793 = vdwg.mxu0
        %794 = vst.msk [vmem:[%s239] sm:$0xff] %vm752, %v783
        %795 = vst.msk [vmem:[%s239 + $0x8] sm:$0xff] %vm752, %v786
        %796 = vst.msk [vmem:[%s239 + $0x10] sm:$0xff] %vm752, %v789
        %797 = vst.msk [vmem:[%s239 + $0x18] sm:$0xff] %vm752, %v792
        %s798 = sand.u32 %s153, 1
        %s799 = scalar_lea.sflag [#allocation3], %s798
        %s800 = sand.u32 %s153, 1
        %s801 = smul.addr %s800, 32
        %s802 = scalar_lea.vmem [#allocation2], %s801
        // Predicated region
        $region41: #{tpu_custom_call.1} parent=39 // pred_check
          %p803 = pneg %p163
        $region42: #{tpu_custom_call.1} parent=39 // pred_check_branch
          %805 = sbr.rel (%p803) target = $region44
        $region43: #{tpu_custom_call.1} parent=39 // pred_region
          %807 = vsyncadd %s799, 0
          %s808 = smul.addr %s23, 4
          %s809 = sadd.s32 %s24, %s808
          %s810 = smul.addr %s809, 8
          %s811 = scalar_lea.hbm %s5, %s810
          %s812 = sshll.u32 %s802, 4
          %s813 = int_to_ptr.vmem [resolvable:$true] %s812
          %s814 = sshll.u32 %s811, 4
          %s815 = int_to_ptr.hbm [resolvable:$true] %s814
          %820 = dma.vmem_to_hbm [thread:$0]  %s813, 512, %s815, %s799, 128, 128, 8
        $region44: #{tpu_custom_call.1} parent=39 // pred_fallthru
          _
      $region40: #{tpu_custom_call.1} parent=5 // pred_fallthru
        _
      %p821 = scmp.le.s32.totalorder 2, %s14
      // Predicated region
      $region45: #{tpu_custom_call.1} parent=5 // pred_check
        %p822 = pneg %p821
      $region46: #{tpu_custom_call.1} parent=5 // pred_check_branch
        %824 = sbr.rel (%p822) target = $region48
      $region47: #{tpu_custom_call.1} parent=5 // pred_region
        %s825 = ssub.s32 %s14, 2
        // Predicated region
        $region49: #{tpu_custom_call.1} parent=47 // pred_check
          %p826 = pneg %p169
        $region50: #{tpu_custom_call.1} parent=47 // pred_check_branch
          %828 = sbr.rel (%p826) target = $region52
        $region51: #{tpu_custom_call.1} parent=47 // pred_region
          %s829 = sand.u32 %s154, 1
          %s830 = scalar_lea.sflag [#allocation3], %s829
          %s831 = sand.u32 %s154, 1
          %s832 = smul.addr %s831, 32
          %s833 = scalar_lea.vmem [#allocation2], %s832
          %835 = dma.done %s830, 512
        $region52: #{tpu_custom_call.1} parent=47 // pred_fallthru
          _
      $region48: #{tpu_custom_call.1} parent=5 // pred_fallthru
        _
    $region6: #{tpu_custom_call.1} parent=1 // loop_footer
      %s18 = sadd.s32 1, %s14
    $region7: #{tpu_custom_call.1} parent=1 // loop_footer_branch
      %13 = sbr.rel target = $region3
    $region8: #{tpu_custom_call.1} parent=1 // loop_exit
      _
    %836 = vsyncpa [#allocation3], 1
    %s837 = scalar_lea.sflag [#allocation3], 1
    %838 = vsyncpa %s837, 1

</llo_original>
